<compile_context>
chip_gen: v6e
topology: v6e:2x2x1
jax: 0.10.0
libtpu: 0.0.40
codegen_flags: <defaults>
</compile_context>

<pallas_src>
import functools

import jax
import jax.numpy as jnp
from jax.experimental import pallas as pl
from jax.experimental.pallas import tpu as pltpu

INPUT_DIM = 1024
DIMS = [INPUT_DIM, 128, 64, 32, 16, 5]  # fc1..fc5
OUT_DIM = 5
PADDED_OUT = 8                          # fc5 padded 5 -> 8 lanes (cheap epilogue/store)
NEG_BIG = -1e30                         # f32-only bias padding -> softmax(pad) == 0
MAX_TILE_B = 1024                       # keeps double-buffered x tile inside scoped VMEM


def _mlp_kernel(x_ref,
                w1_ref, b1_ref,
                w2_ref, b2_ref,
                w3_ref, b3_ref,
                w4_ref, b4_ref,
                w5_ref, b5_ref,
                o_ref):
    """Fused 5-layer MLP + ReLU + softmax for one (tile_b, 1024) batch tile."""
    # fc1: operands in w1's dtype (bf16 on the fast path; cast happens in VMEM,
    # no extra HBM traffic), f32 MXU accumulation.
    x = x_ref[...].astype(w1_ref.dtype)
    h = jnp.dot(x, w1_ref[...], preferred_element_type=jnp.float32) + b1_ref[...]
    h = jnp.maximum(h, 0.0)

    # fc2 .. fc4 with ReLU (dropout == identity in eval mode)
    h = jnp.dot(h, w2_ref[...], preferred_element_type=jnp.float32) + b2_ref[...]
    h = jnp.maximum(h, 0.0)
    h = jnp.dot(h, w3_ref[...], preferred_element_type=jnp.float32) + b3_ref[...]
    h = jnp.maximum(h, 0.0)
    h = jnp.dot(h, w4_ref[...], preferred_element_type=jnp.float32) + b4_ref[...]
    h = jnp.maximum(h, 0.0)

    # fc5 (padded to 8 output cols; pad bias = -1e30 in f32 -> exp underflows to
    # exactly 0), then softmax over the lane axis with an exact divide.
    logits = jnp.dot(h, w5_ref[...], preferred_element_type=jnp.float32) + b5_ref[...]
    m = jnp.max(logits, axis=1, keepdims=True)
    e = jnp.exp(logits - m)
    denom = jnp.sum(e, axis=1, keepdims=True)
    o_ref[...] = (e / denom).astype(o_ref.dtype)


def _round_up(v, m):
    return ((v + m - 1) // m) * m


def _choose_tiling(batch, max_tile=MAX_TILE_B):
    """Return (padded_batch, tile_b).

    Pads the batch only to a multiple of 8, then picks the largest batch tile
    (multiple of 8, divisor of the padded batch, <= max_tile) that gives
      * grid >= 4 with a reasonably large tile (>= 256 rows) if possible
        (>= 2 pipelined steps per TensorCore on v7x),
      * else grid >= 2 with tile >= 128 rows,
      * else a single step over the whole (small) batch.
    Only if no sane divisor exists for a large batch do we pad further to a
    multiple of 512.
    """
    bp = _round_up(batch, 8)
    divisors = [t for t in range(8, min(bp, max_tile) + 1, 8) if bp % t == 0]
    for min_grid, min_tile in ((4, 256), (2, 128), (1, 128)):
        cands = [t for t in divisors if bp // t >= min_grid and t >= min_tile]
        if cands:
            return bp, max(cands)
    if bp > max_tile:
        tile = 512
        return _round_up(bp, tile), tile
    return bp, bp  # small batch: one step over everything


def prepare_params(params, fc1_bf16=True):
    """One-time host-side prep (hoisted out of the jitted call path).

    params: 5 tuples of (W_(in,out), b_(1,out))  (weights transposed vs PyTorch).
    Pads fc5 to PADDED_OUT columns (extra W cols = 0, extra bias = NEG_BIG) and
    optionally casts w1 to bf16 for the mixed-precision fc1 path.
    """
    (w1, b1), (w2, b2), (w3, b3), (w4, b4), (w5, b5) = params
    w5p = jnp.pad(w5, ((0, 0), (0, PADDED_OUT - w5.shape[1])))
    # NOTE: NEG_BIG is only safe in f32; do not cast b5p/logits to bf16.
    b5p = jnp.pad(b5, ((0, 0), (0, PADDED_OUT - b5.shape[1])),
                  constant_values=NEG_BIG)
    if fc1_bf16:
        w1 = w1.astype(jnp.bfloat16)
    return (w1, b1, w2, b2, w3, b3, w4, b4, w5p, b5p)


@functools.partial(jax.jit, static_argnames=("tile_b",))
def imagebind_mlp_prepared(x, prepared, tile_b=None):
    """x: (B, 1024) float32 or bfloat16.  prepared: output of prepare_params()."""
    B, D = x.shape
    assert D == INPUT_DIM
    if tile_b is None:
        Bp, tile_b = _choose_tiling(B)
    else:
        Bp = _round_up(B, tile_b)

    # Pad only the ragged tail (a few rows); common case (B % 8 == 0) is a no-op.
    if Bp != B:
        x = jnp.pad(x, ((0, Bp - B), (0, 0)))

    in_specs = [pl.BlockSpec((tile_b, D), lambda i: (i, 0))]
    for p in prepared:
        # Full weight/bias blocks resident in VMEM; constant index_map means
        # no re-DMA of the parameters across grid steps.
        in_specs.append(pl.BlockSpec(p.shape, lambda i: (0, 0)))

    out_padded = pl.pallas_call(
        _mlp_kernel,
        out_shape=jax.ShapeDtypeStruct((Bp, PADDED_OUT), jnp.float32),
        grid_spec=pltpu.PrefetchScalarGridSpec(
            num_scalar_prefetch=0,
            grid=(Bp // tile_b,),
            in_specs=in_specs,
            out_specs=pl.BlockSpec((tile_b, PADDED_OUT), lambda i: (i, 0)),
        ),
        compiler_params=pltpu.CompilerParams(
            dimension_semantics=("parallel",)),  # megacore-shard the batch axis
    )(x, *prepared)

    return out_padded[:B, :OUT_DIM]


def imagebind_mlp(x, params, fc1_bf16=True, tile_b=None):
    """Convenience wrapper; prefer prepare_params() once + imagebind_mlp_prepared()."""
    return imagebind_mlp_prepared(x, prepare_params(params, fc1_bf16), tile_b=tile_b)


def init_params(key):
    """Deterministic synthetic params; weights stored as (in, out)."""
    params = []
    for li in range(5):
        d_in, d_out = DIMS[li], DIMS[li + 1]
        key, kw, kb = jax.random.split(key, 3)
        bound = 1.0 / jnp.sqrt(d_in)  # same scale as PyTorch Linear default init
        w = jax.random.uniform(kw, (d_in, d_out), jnp.float32, -bound, bound)
        b = jax.random.uniform(kb, (1, d_out), jnp.float32, -bound, bound)
        params.append((w, b))
    return params


def reference_mlp(x, params):
    h = x.astype(jnp.float32)
    for li, (w, b) in enumerate(params):
        h = h @ w + b
        if li < 4:
            h = jnp.maximum(h, 0.0)
    return jax.nn.softmax(h, axis=1)


if __name__ == "__main__":
    key = jax.random.PRNGKey(0)
    key, kx = jax.random.split(key)
    B = 8
    x = jax.random.normal(kx, (B, INPUT_DIM), jnp.float32)
    params = init_params(key)
    ref = reference_mlp(x, params)

    # Exact f32 path (fc1 in f32).
    prep_f32 = prepare_params(params, fc1_bf16=False)
    out = jax.block_until_ready(imagebind_mlp_prepared(x, prep_f32))
    assert out.shape == (B, OUT_DIM)
    assert jnp.allclose(out, ref, atol=5e-3, rtol=5e-3), "f32 path mismatch vs reference"
    assert jnp.allclose(out.sum(axis=1), 1.0, atol=1e-4), "softmax rows must sum to 1"

    # Default fast path: fc1 operands bf16 (in-kernel cast), f32 accumulation.
    prep = prepare_params(params, fc1_bf16=True)
    out_fast = jax.block_until_ready(imagebind_mlp_prepared(x, prep))
    assert out_fast.shape == (B, OUT_DIM)
    assert bool(jnp.all(jnp.isfinite(out_fast)))
    assert jnp.allclose(out_fast, ref, atol=3e-2), "bf16-fc1 path mismatch vs reference"
    assert jnp.allclose(out_fast.sum(axis=1), 1.0, atol=1e-4), "softmax rows must sum to 1"

    # Ragged batch: pads only 300 -> 304, tile_b=152, grid=2 (no 2x padding waste).
    key, kx2 = jax.random.split(key)
    x_big = jax.random.normal(kx2, (300, INPUT_DIM), jnp.float32)
    out_big = jax.block_until_ready(imagebind_mlp_prepared(x_big, prep))
    ref_big = reference_mlp(x_big, params)
    assert out_big.shape == (300, OUT_DIM)
    assert jnp.allclose(out_big, ref_big, atol=3e-2), "ragged-batch mismatch"

    # bf16 input straight from an upstream producer (no wrapper cast).
    out_bf16 = jax.block_until_ready(
        imagebind_mlp_prepared(x.astype(jnp.bfloat16), prep))
    assert out_bf16.shape == (B, OUT_DIM)
    assert jnp.allclose(out_bf16, ref, atol=3e-2), "bf16-input path mismatch vs reference"

    print("KERNEL_OK")
</pallas_src>

<mosaic_0001>
module attributes {stable_mosaic.version = 11 : i64} {
  func.func @_mlp_kernel(%arg0: i32, %arg1: memref<8x1024xf32, #tpu.memory_space<vmem>>, %arg2: memref<1024x128xf32, #tpu.memory_space<vmem>>, %arg3: memref<1x128xf32, #tpu.memory_space<vmem>>, %arg4: memref<128x64xf32, #tpu.memory_space<vmem>>, %arg5: memref<1x64xf32, #tpu.memory_space<vmem>>, %arg6: memref<64x32xf32, #tpu.memory_space<vmem>>, %arg7: memref<1x32xf32, #tpu.memory_space<vmem>>, %arg8: memref<32x16xf32, #tpu.memory_space<vmem>>, %arg9: memref<1x16xf32, #tpu.memory_space<vmem>>, %arg10: memref<16x8xf32, #tpu.memory_space<vmem>>, %arg11: memref<1x8xf32, #tpu.memory_space<vmem>>, %arg12: memref<8x8xf32, #tpu.memory_space<vmem>>) attributes {dimension_semantics = [#tpu.dimension_semantics<parallel>], iteration_bounds = array<i64: 1>, scalar_prefetch = 0 : i64, scratch_operands = 0 : i64, tpu.core_type = #tpu.core_type<tc>, window_params = [{transform_indices = @transform_0, window_bounds = array<i64: 8, 1024>}, {pipeline_mode = #tpu.pipeline_mode<synchronous>, transform_indices = @transform_1, window_bounds = array<i64: 1024, 128>}, {pipeline_mode = #tpu.pipeline_mode<synchronous>, transform_indices = @transform_2, window_bounds = array<i64: 1, 128>}, {pipeline_mode = #tpu.pipeline_mode<synchronous>, transform_indices = @transform_3, window_bounds = array<i64: 128, 64>}, {pipeline_mode = #tpu.pipeline_mode<synchronous>, transform_indices = @transform_4, window_bounds = array<i64: 1, 64>}, {pipeline_mode = #tpu.pipeline_mode<synchronous>, transform_indices = @transform_5, window_bounds = array<i64: 64, 32>}, {pipeline_mode = #tpu.pipeline_mode<synchronous>, transform_indices = @transform_6, window_bounds = array<i64: 1, 32>}, {pipeline_mode = #tpu.pipeline_mode<synchronous>, transform_indices = @transform_7, window_bounds = array<i64: 32, 16>}, {pipeline_mode = #tpu.pipeline_mode<synchronous>, transform_indices = @transform_8, window_bounds = array<i64: 1, 16>}, {pipeline_mode = #tpu.pipeline_mode<synchronous>, transform_indices = @transform_9, window_bounds = array<i64: 16, 8>}, {pipeline_mode = #tpu.pipeline_mode<synchronous>, transform_indices = @transform_10, window_bounds = array<i64: 1, 8>}, {transform_indices = @transform_11, window_bounds = array<i64: 8, 8>}]} {
    %c0 = arith.constant 0 : index
    %c0_0 = arith.constant 0 : index
    %0 = vector.load %arg1[%c0, %c0_0] : memref<8x1024xf32, #tpu.memory_space<vmem>>, vector<8x1024xf32>
    %c0_1 = arith.constant 0 : index
    %c0_2 = arith.constant 0 : index
    %1 = vector.load %arg2[%c0_1, %c0_2] : memref<1024x128xf32, #tpu.memory_space<vmem>>, vector<1024x128xf32>
    %cst = arith.constant dense<0.000000e+00> : vector<8x128xf32>
    %2 = tpu.matmul %0, %1, %cst {dimension_numbers = #tpu.dot_dimension_numbers<[1], [0], [0], [1], [0, 0, 1, 1], [], []>} : vector<8x1024xf32>, vector<1024x128xf32>, vector<8x128xf32> -> vector<8x128xf32>
    %c0_3 = arith.constant 0 : index
    %c0_4 = arith.constant 0 : index
    %3 = vector.load %arg3[%c0_3, %c0_4] : memref<1x128xf32, #tpu.memory_space<vmem>>, vector<1x128xf32>
    %4 = vector.broadcast %3 : vector<1x128xf32> to vector<8x128xf32>
    %5 = arith.addf %2, %4 : vector<8x128xf32>
    %cst_5 = arith.constant 0.000000e+00 : f32
    %6 = vector.broadcast %cst_5 : f32 to vector<8x128xf32>
    %7 = arith.maximumf %5, %6 : vector<8x128xf32>
    %c0_6 = arith.constant 0 : index
    %c0_7 = arith.constant 0 : index
    %8 = vector.load %arg4[%c0_6, %c0_7] : memref<128x64xf32, #tpu.memory_space<vmem>>, vector<128x64xf32>
    %cst_8 = arith.constant dense<0.000000e+00> : vector<8x64xf32>
    %9 = tpu.matmul %7, %8, %cst_8 {dimension_numbers = #tpu.dot_dimension_numbers<[1], [0], [0], [1], [0, 0, 1, 1], [], []>} : vector<8x128xf32>, vector<128x64xf32>, vector<8x64xf32> -> vector<8x64xf32>
    %c0_9 = arith.constant 0 : index
    %c0_10 = arith.constant 0 : index
    %10 = vector.load %arg5[%c0_9, %c0_10] : memref<1x64xf32, #tpu.memory_space<vmem>>, vector<1x64xf32>
    %11 = vector.broadcast %10 : vector<1x64xf32> to vector<8x64xf32>
    %12 = arith.addf %9, %11 : vector<8x64xf32>
    %cst_11 = arith.constant 0.000000e+00 : f32
    %13 = vector.broadcast %cst_11 : f32 to vector<8x64xf32>
    %14 = arith.maximumf %12, %13 : vector<8x64xf32>
    %c0_12 = arith.constant 0 : index
    %c0_13 = arith.constant 0 : index
    %15 = vector.load %arg6[%c0_12, %c0_13] : memref<64x32xf32, #tpu.memory_space<vmem>>, vector<64x32xf32>
    %cst_14 = arith.constant dense<0.000000e+00> : vector<8x32xf32>
    %16 = tpu.matmul %14, %15, %cst_14 {dimension_numbers = #tpu.dot_dimension_numbers<[1], [0], [0], [1], [0, 0, 1, 1], [], []>} : vector<8x64xf32>, vector<64x32xf32>, vector<8x32xf32> -> vector<8x32xf32>
    %c0_15 = arith.constant 0 : index
    %c0_16 = arith.constant 0 : index
    %17 = vector.load %arg7[%c0_15, %c0_16] : memref<1x32xf32, #tpu.memory_space<vmem>>, vector<1x32xf32>
    %18 = vector.broadcast %17 : vector<1x32xf32> to vector<8x32xf32>
    %19 = arith.addf %16, %18 : vector<8x32xf32>
    %cst_17 = arith.constant 0.000000e+00 : f32
    %20 = vector.broadcast %cst_17 : f32 to vector<8x32xf32>
    %21 = arith.maximumf %19, %20 : vector<8x32xf32>
    %c0_18 = arith.constant 0 : index
    %c0_19 = arith.constant 0 : index
    %22 = vector.load %arg8[%c0_18, %c0_19] : memref<32x16xf32, #tpu.memory_space<vmem>>, vector<32x16xf32>
    %cst_20 = arith.constant dense<0.000000e+00> : vector<8x16xf32>
    %23 = tpu.matmul %21, %22, %cst_20 {dimension_numbers = #tpu.dot_dimension_numbers<[1], [0], [0], [1], [0, 0, 1, 1], [], []>} : vector<8x32xf32>, vector<32x16xf32>, vector<8x16xf32> -> vector<8x16xf32>
    %c0_21 = arith.constant 0 : index
    %c0_22 = arith.constant 0 : index
    %24 = vector.load %arg9[%c0_21, %c0_22] : memref<1x16xf32, #tpu.memory_space<vmem>>, vector<1x16xf32>
    %25 = vector.broadcast %24 : vector<1x16xf32> to vector<8x16xf32>
    %26 = arith.addf %23, %25 : vector<8x16xf32>
    %cst_23 = arith.constant 0.000000e+00 : f32
    %27 = vector.broadcast %cst_23 : f32 to vector<8x16xf32>
    %28 = arith.maximumf %26, %27 : vector<8x16xf32>
    %c0_24 = arith.constant 0 : index
    %c0_25 = arith.constant 0 : index
    %29 = vector.load %arg10[%c0_24, %c0_25] : memref<16x8xf32, #tpu.memory_space<vmem>>, vector<16x8xf32>
    %cst_26 = arith.constant dense<0.000000e+00> : vector<8x8xf32>
    %30 = tpu.matmul %28, %29, %cst_26 {dimension_numbers = #tpu.dot_dimension_numbers<[1], [0], [0], [1], [0, 0, 1, 1], [], []>} : vector<8x16xf32>, vector<16x8xf32>, vector<8x8xf32> -> vector<8x8xf32>
    %c0_27 = arith.constant 0 : index
    %c0_28 = arith.constant 0 : index
    %31 = vector.load %arg11[%c0_27, %c0_28] : memref<1x8xf32, #tpu.memory_space<vmem>>, vector<1x8xf32>
    %32 = vector.broadcast %31 : vector<1x8xf32> to vector<8x8xf32>
    %33 = arith.addf %30, %32 : vector<8x8xf32>
    %cst_29 = arith.constant dense<0xFF800000> : vector<8xf32>
    %34 = vector.multi_reduction <maximumf>, %33, %cst_29 [1] : vector<8x8xf32> to vector<8xf32>
    %35 = vector.shape_cast %34 : vector<8xf32> to vector<8x1xf32>
    %36 = vector.broadcast %35 : vector<8x1xf32> to vector<8x8xf32>
    %37 = arith.subf %33, %36 : vector<8x8xf32>
    %38 = math.exp %37 : vector<8x8xf32>
    %cst_30 = arith.constant dense<0.000000e+00> : vector<8xf32>
    %39 = vector.multi_reduction <add>, %38, %cst_30 [1] : vector<8x8xf32> to vector<8xf32>
    %40 = vector.shape_cast %39 : vector<8xf32> to vector<8x1xf32>
    %41 = vector.broadcast %40 : vector<8x1xf32> to vector<8x8xf32>
    %42 = arith.divf %38, %41 : vector<8x8xf32>
    %c0_31 = arith.constant 0 : index
    %c0_32 = arith.constant 0 : index
    %43 = vector.load %arg12[%c0_31, %c0_32] : memref<8x8xf32, #tpu.memory_space<vmem>>, vector<8x8xf32>
    tpu.vector_store %arg12[%c0_31, %c0_32], %42 {strides = array<i32>} : memref<8x8xf32, #tpu.memory_space<vmem>>, vector<8x8xf32>,
    return
  }
  func.func @transform_0(%arg0: i32) -> (i32, i32) {
    %c0_i32 = arith.constant 0 : i32
    %c0_i32_0 = arith.constant 0 : i32
    return %arg0, %c0_i32 : i32, i32
  }
  func.func @transform_1(%arg0: i32) -> (i32, i32) {
    %c0_i32 = arith.constant 0 : i32
    %c0_i32_0 = arith.constant 0 : i32
    %c0_i32_1 = arith.constant 0 : i32
    return %c0_i32, %c0_i32_0 : i32, i32
  }
  func.func @transform_2(%arg0: i32) -> (i32, i32) {
    %c0_i32 = arith.constant 0 : i32
    %c0_i32_0 = arith.constant 0 : i32
    %c0_i32_1 = arith.constant 0 : i32
    return %c0_i32, %c0_i32_0 : i32, i32
  }
  func.func @transform_3(%arg0: i32) -> (i32, i32) {
    %c0_i32 = arith.constant 0 : i32
    %c0_i32_0 = arith.constant 0 : i32
    %c0_i32_1 = arith.constant 0 : i32
    return %c0_i32, %c0_i32_0 : i32, i32
  }
  func.func @transform_4(%arg0: i32) -> (i32, i32) {
    %c0_i32 = arith.constant 0 : i32
    %c0_i32_0 = arith.constant 0 : i32
    %c0_i32_1 = arith.constant 0 : i32
    return %c0_i32, %c0_i32_0 : i32, i32
  }
  func.func @transform_5(%arg0: i32) -> (i32, i32) {
    %c0_i32 = arith.constant 0 : i32
    %c0_i32_0 = arith.constant 0 : i32
    %c0_i32_1 = arith.constant 0 : i32
    return %c0_i32, %c0_i32_0 : i32, i32
  }
  func.func @transform_6(%arg0: i32) -> (i32, i32) {
    %c0_i32 = arith.constant 0 : i32
    %c0_i32_0 = arith.constant 0 : i32
    %c0_i32_1 = arith.constant 0 : i32
    return %c0_i32, %c0_i32_0 : i32, i32
  }
  func.func @transform_7(%arg0: i32) -> (i32, i32) {
    %c0_i32 = arith.constant 0 : i32
    %c0_i32_0 = arith.constant 0 : i32
    %c0_i32_1 = arith.constant 0 : i32
    return %c0_i32, %c0_i32_0 : i32, i32
  }
  func.func @transform_8(%arg0: i32) -> (i32, i32) {
    %c0_i32 = arith.constant 0 : i32
    %c0_i32_0 = arith.constant 0 : i32
    %c0_i32_1 = arith.constant 0 : i32
    return %c0_i32, %c0_i32_0 : i32, i32
  }
  func.func @transform_9(%arg0: i32) -> (i32, i32) {
    %c0_i32 = arith.constant 0 : i32
    %c0_i32_0 = arith.constant 0 : i32
    %c0_i32_1 = arith.constant 0 : i32
    return %c0_i32, %c0_i32_0 : i32, i32
  }
  func.func @transform_10(%arg0: i32) -> (i32, i32) {
    %c0_i32 = arith.constant 0 : i32
    %c0_i32_0 = arith.constant 0 : i32
    %c0_i32_1 = arith.constant 0 : i32
    return %c0_i32, %c0_i32_0 : i32, i32
  }
  func.func @transform_11(%arg0: i32) -> (i32, i32) {
    %c0_i32 = arith.constant 0 : i32
    %c0_i32_0 = arith.constant 0 : i32
    return %arg0, %c0_i32 : i32, i32
  }
}

</mosaic_0001>

<llo_original>
// kernel: imagebind_mlp_prepared.1
$region0: #{imagebind_mlp_prepared.1}
  #allocation0 [shape = 'u32[]', space=smem, size = 0x4, offset = 0x4, fixed_abs, tag = 'smem constant byte address 0x4 - core index']
  #allocation1 [shape = 'u32[144,128]{1,0:T(1,128)}', space=vmem, size = 0x12000, scoped, tag = 'internal scratch']
  %s0 = inlined_call_operand.vmem [shape: f32[8,1024], index: 0, kind: input, shape index: {}]
  %s1 = inlined_call_operand.hbm [shape: f32[1024,128], index: 1, kind: input, shape index: {}]
  %s2 = inlined_call_operand.vmem [shape: f32[1,128], index: 2, kind: input, shape index: {}]
  %s3 = inlined_call_operand.vmem [shape: f32[128,64], index: 3, kind: input, shape index: {}]
  %s4 = inlined_call_operand.vmem [shape: f32[1,64], index: 4, kind: input, shape index: {}]
  %s5 = inlined_call_operand.vmem [shape: f32[64,32], index: 5, kind: input, shape index: {}]
  %s6 = inlined_call_operand.vmem [shape: f32[1,32], index: 6, kind: input, shape index: {}]
  %s7 = inlined_call_operand.vmem [shape: f32[32,16], index: 7, kind: input, shape index: {}]
  %s8 = inlined_call_operand.vmem [shape: f32[1,16], index: 8, kind: input, shape index: {}]
  %s9 = inlined_call_operand.vmem [shape: f32[16,8], index: 9, kind: input, shape index: {}]
  %s10 = inlined_call_operand.vmem [shape: f32[1,8], index: 10, kind: input, shape index: {}]
  %s11 = inlined_call_operand.hbm [shape: f32[8,8], index: 11, kind: output, shape index: {}]
  %s12 = sld [smem:[#allocation0]]
  $region58: #{imagebind_mlp_prepared.1} parent=0
    _
  %s14 = ssub.s32 1, %s12
  %s15 = scalar_select 0, %s14, %s12
  $region1: #{imagebind_mlp_prepared.1} parent=0
    #allocation2 [shape = 'u8[524288]{0}', space=vmem, size = 0x80000, scoped, tag = 'input window, operand 1, single buffered']
    #allocation3 [shape = 's32[1]{0}', space=sflag, size = 0x4, scoped, tag = 'scoped memory for imagebind_mlp_prepared.1']
    #allocation4 [shape = 's32[1]{0}', space=sflag, size = 0x4, scoped, tag = 'scoped memory for imagebind_mlp_prepared.1']
    #allocation5 [shape = 'u8[4096]{0}', space=vmem, size = 0x1000, scoped, tag = 'output window, operand 0, single buffered']
    %16 = vsyncpa [#allocation3], 0
    %17 = vsyncpa [#allocation4], 0
    // Predicated region
    $region2: #{imagebind_mlp_prepared.1} parent=1 // pred_check
      _
    $region3: #{imagebind_mlp_prepared.1} parent=1 // pred_check_branch
      %19 = sbr.rel (0) target = $region5
    $region4: #{imagebind_mlp_prepared.1} parent=1 // pred_region
      _
    $region5: #{imagebind_mlp_prepared.1} parent=1 // pred_fallthru
      _
    // Predicated region
    $region6: #{imagebind_mlp_prepared.1} parent=1 // pred_check
      _
    $region7: #{imagebind_mlp_prepared.1} parent=1 // pred_check_branch
      %21 = sbr.rel (0) target = $region9
    $region8: #{imagebind_mlp_prepared.1} parent=1 // pred_region
      %s23 = ssub.s32 16384, 16384
      %24 = vsyncadd [#allocation3], %s23
      %s25 = sshll.u32 [#allocation2], 4
      %s26 = int_to_ptr.vmem [resolvable:$true] %s25
      %31 = dma.hbm_to_vmem [thread:$0]  %s1, 16384, %s26, [#allocation3], 128, 128, 8
    $region9: #{imagebind_mlp_prepared.1} parent=1 // pred_fallthru
      _
    // Predicated region
    $region10: #{imagebind_mlp_prepared.1} parent=1 // pred_check
      _
    $region11: #{imagebind_mlp_prepared.1} parent=1 // pred_check_branch
      %33 = sbr.rel (0) target = $region13
    $region12: #{imagebind_mlp_prepared.1} parent=1 // pred_region
      _
    $region13: #{imagebind_mlp_prepared.1} parent=1 // pred_fallthru
      _
    // Predicated region
    $region14: #{imagebind_mlp_prepared.1} parent=1 // pred_check
      _
    $region15: #{imagebind_mlp_prepared.1} parent=1 // pred_check_branch
      %35 = sbr.rel (0) target = $region17
    $region16: #{imagebind_mlp_prepared.1} parent=1 // pred_region
      _
    $region17: #{imagebind_mlp_prepared.1} parent=1 // pred_fallthru
      _
    // Predicated region
    $region18: #{imagebind_mlp_prepared.1} parent=1 // pred_check
      _
    $region19: #{imagebind_mlp_prepared.1} parent=1 // pred_check_branch
      %37 = sbr.rel (0) target = $region21
    $region20: #{imagebind_mlp_prepared.1} parent=1 // pred_region
      _
    $region21: #{imagebind_mlp_prepared.1} parent=1 // pred_fallthru
      _
    // Predicated region
    $region22: #{imagebind_mlp_prepared.1} parent=1 // pred_check
      _
    $region23: #{imagebind_mlp_prepared.1} parent=1 // pred_check_branch
      %39 = sbr.rel (0) target = $region25
    $region24: #{imagebind_mlp_prepared.1} parent=1 // pred_region
      _
    $region25: #{imagebind_mlp_prepared.1} parent=1 // pred_fallthru
      _
    // Predicated region
    $region26: #{imagebind_mlp_prepared.1} parent=1 // pred_check
      _
    $region27: #{imagebind_mlp_prepared.1} parent=1 // pred_check_branch
      %41 = sbr.rel (0) target = $region29
    $region28: #{imagebind_mlp_prepared.1} parent=1 // pred_region
      _
    $region29: #{imagebind_mlp_prepared.1} parent=1 // pred_fallthru
      _
    // Predicated region
    $region30: #{imagebind_mlp_prepared.1} parent=1 // pred_check
      _
    $region31: #{imagebind_mlp_prepared.1} parent=1 // pred_check_branch
      %43 = sbr.rel (0) target = $region33
    $region32: #{imagebind_mlp_prepared.1} parent=1 // pred_region
      _
    $region33: #{imagebind_mlp_prepared.1} parent=1 // pred_fallthru
      _
    // Predicated region
    $region34: #{imagebind_mlp_prepared.1} parent=1 // pred_check
      _
    $region35: #{imagebind_mlp_prepared.1} parent=1 // pred_check_branch
      %45 = sbr.rel (0) target = $region37
    $region36: #{imagebind_mlp_prepared.1} parent=1 // pred_region
      _
    $region37: #{imagebind_mlp_prepared.1} parent=1 // pred_fallthru
      _
    // Predicated region
    $region38: #{imagebind_mlp_prepared.1} parent=1 // pred_check
      _
    $region39: #{imagebind_mlp_prepared.1} parent=1 // pred_check_branch
      %47 = sbr.rel (0) target = $region41
    $region40: #{imagebind_mlp_prepared.1} parent=1 // pred_region
      _
    $region41: #{imagebind_mlp_prepared.1} parent=1 // pred_fallthru
      _
    // Predicated region
    $region42: #{imagebind_mlp_prepared.1} parent=1 // pred_check
      _
    $region43: #{imagebind_mlp_prepared.1} parent=1 // pred_check_branch
      %49 = sbr.rel (0) target = $region45
    $region44: #{imagebind_mlp_prepared.1} parent=1 // pred_region
      _
    $region45: #{imagebind_mlp_prepared.1} parent=1 // pred_fallthru
      _
    // Predicated region
    $region46: #{imagebind_mlp_prepared.1} parent=1 // pred_check
      _
    $region47: #{imagebind_mlp_prepared.1} parent=1 // pred_check_branch
      %51 = sbr.rel (0) target = $region49
    $region48: #{imagebind_mlp_prepared.1} parent=1 // pred_region
      %52 = dma.done [#allocation3], 16384
    $region49: #{imagebind_mlp_prepared.1} parent=1 // pred_fallthru
      _
    %v53 = vld [vmem:[%s0] sm:$0xff]
    %v54 = vld [vmem:[%s0 + $0x8] sm:$0xff]
    %v55 = vld [vmem:[%s0 + $0x10] sm:$0xff]
    %v56 = vld [vmem:[%s0 + $0x18] sm:$0xff]
    %v57 = vld [vmem:[%s0 + $0x20] sm:$0xff]
    %v58 = vld [vmem:[%s0 + $0x28] sm:$0xff]
    %v59 = vld [vmem:[%s0 + $0x30] sm:$0xff]
    %v60 = vld [vmem:[%s0 + $0x38] sm:$0xff]
    %v61 = vld [vmem:[#allocation2] sm:$0xff]
    %v62 = vld [vmem:[#allocation2 + $0x8] sm:$0xff]
    %v63 = vld [vmem:[#allocation2 + $0x10] sm:$0xff]
    %v64 = vld [vmem:[#allocation2 + $0x18] sm:$0xff]
    %v65 = vld [vmem:[#allocation2 + $0x20] sm:$0xff]
    %v66 = vld [vmem:[#allocation2 + $0x28] sm:$0xff]
    %v67 = vld [vmem:[#allocation2 + $0x30] sm:$0xff]
    %v68 = vld [vmem:[#allocation2 + $0x38] sm:$0xff]
    %v69 = vld [vmem:[#allocation2 + $0x40] sm:$0xff]
    %v70 = vld [vmem:[#allocation2 + $0x48] sm:$0xff]
    %v71 = vld [vmem:[#allocation2 + $0x50] sm:$0xff]
    %v72 = vld [vmem:[#allocation2 + $0x58] sm:$0xff]
    %v73 = vld [vmem:[#allocation2 + $0x60] sm:$0xff]
    %v74 = vld [vmem:[#allocation2 + $0x68] sm:$0xff]
    %v75 = vld [vmem:[#allocation2 + $0x70] sm:$0xff]
    %v76 = vld [vmem:[#allocation2 + $0x78] sm:$0xff]
    %v77 = vld [vmem:[#allocation2 + $0x80] sm:$0xff]
    %v78 = vld [vmem:[#allocation2 + $0x88] sm:$0xff]
    %v79 = vld [vmem:[#allocation2 + $0x90] sm:$0xff]
    %v80 = vld [vmem:[#allocation2 + $0x98] sm:$0xff]
    %v81 = vld [vmem:[#allocation2 + $0xa0] sm:$0xff]
    %v82 = vld [vmem:[#allocation2 + $0xa8] sm:$0xff]
    %v83 = vld [vmem:[#allocation2 + $0xb0] sm:$0xff]
    %v84 = vld [vmem:[#allocation2 + $0xb8] sm:$0xff]
    %v85 = vld [vmem:[#allocation2 + $0xc0] sm:$0xff]
    %v86 = vld [vmem:[#allocation2 + $0xc8] sm:$0xff]
    %v87 = vld [vmem:[#allocation2 + $0xd0] sm:$0xff]
    %v88 = vld [vmem:[#allocation2 + $0xd8] sm:$0xff]
    %v89 = vld [vmem:[#allocation2 + $0xe0] sm:$0xff]
    %v90 = vld [vmem:[#allocation2 + $0xe8] sm:$0xff]
    %v91 = vld [vmem:[#allocation2 + $0xf0] sm:$0xff]
    %v92 = vld [vmem:[#allocation2 + $0xf8] sm:$0xff]
    %v93 = vld [vmem:[#allocation2 + $0x100] sm:$0xff]
    %v94 = vld [vmem:[#allocation2 + $0x108] sm:$0xff]
    %v95 = vld [vmem:[#allocation2 + $0x110] sm:$0xff]
    %v96 = vld [vmem:[#allocation2 + $0x118] sm:$0xff]
    %v97 = vld [vmem:[#allocation2 + $0x120] sm:$0xff]
    %v98 = vld [vmem:[#allocation2 + $0x128] sm:$0xff]
    %v99 = vld [vmem:[#allocation2 + $0x130] sm:$0xff]
    %v100 = vld [vmem:[#allocation2 + $0x138] sm:$0xff]
    %v101 = vld [vmem:[#allocation2 + $0x140] sm:$0xff]
    %v102 = vld [vmem:[#allocation2 + $0x148] sm:$0xff]
    %v103 = vld [vmem:[#allocation2 + $0x150] sm:$0xff]
    %v104 = vld [vmem:[#allocation2 + $0x158] sm:$0xff]
    %v105 = vld [vmem:[#allocation2 + $0x160] sm:$0xff]
    %v106 = vld [vmem:[#allocation2 + $0x168] sm:$0xff]
    %v107 = vld [vmem:[#allocation2 + $0x170] sm:$0xff]
    %v108 = vld [vmem:[#allocation2 + $0x178] sm:$0xff]
    %v109 = vld [vmem:[#allocation2 + $0x180] sm:$0xff]
    %v110 = vld [vmem:[#allocation2 + $0x188] sm:$0xff]
    %v111 = vld [vmem:[#allocation2 + $0x190] sm:$0xff]
    %v112 = vld [vmem:[#allocation2 + $0x198] sm:$0xff]
    %v113 = vld [vmem:[#allocation2 + $0x1a0] sm:$0xff]
    %v114 = vld [vmem:[#allocation2 + $0x1a8] sm:$0xff]
    %v115 = vld [vmem:[#allocation2 + $0x1b0] sm:$0xff]
    %v116 = vld [vmem:[#allocation2 + $0x1b8] sm:$0xff]
    %v117 = vld [vmem:[#allocation2 + $0x1c0] sm:$0xff]
    %v118 = vld [vmem:[#allocation2 + $0x1c8] sm:$0xff]
    %v119 = vld [vmem:[#allocation2 + $0x1d0] sm:$0xff]
    %v120 = vld [vmem:[#allocation2 + $0x1d8] sm:$0xff]
    %v121 = vld [vmem:[#allocation2 + $0x1e0] sm:$0xff]
    %v122 = vld [vmem:[#allocation2 + $0x1e8] sm:$0xff]
    %v123 = vld [vmem:[#allocation2 + $0x1f0] sm:$0xff]
    %v124 = vld [vmem:[#allocation2 + $0x1f8] sm:$0xff]
    %v125 = vld [vmem:[#allocation2 + $0x200] sm:$0xff]
    %v126 = vld [vmem:[#allocation2 + $0x208] sm:$0xff]
    %v127 = vld [vmem:[#allocation2 + $0x210] sm:$0xff]
    %v128 = vld [vmem:[#allocation2 + $0x218] sm:$0xff]
    %v129 = vld [vmem:[#allocation2 + $0x220] sm:$0xff]
    %v130 = vld [vmem:[#allocation2 + $0x228] sm:$0xff]
    %v131 = vld [vmem:[#allocation2 + $0x230] sm:$0xff]
    %v132 = vld [vmem:[#allocation2 + $0x238] sm:$0xff]
    %v133 = vld [vmem:[#allocation2 + $0x240] sm:$0xff]
    %v134 = vld [vmem:[#allocation2 + $0x248] sm:$0xff]
    %v135 = vld [vmem:[#allocation2 + $0x250] sm:$0xff]
    %v136 = vld [vmem:[#allocation2 + $0x258] sm:$0xff]
    %v137 = vld [vmem:[#allocation2 + $0x260] sm:$0xff]
    %v138 = vld [vmem:[#allocation2 + $0x268] sm:$0xff]
    %v139 = vld [vmem:[#allocation2 + $0x270] sm:$0xff]
    %v140 = vld [vmem:[#allocation2 + $0x278] sm:$0xff]
    %v141 = vld [vmem:[#allocation2 + $0x280] sm:$0xff]
    %v142 = vld [vmem:[#allocation2 + $0x288] sm:$0xff]
    %v143 = vld [vmem:[#allocation2 + $0x290] sm:$0xff]
    %v144 = vld [vmem:[#allocation2 + $0x298] sm:$0xff]
    %v145 = vld [vmem:[#allocation2 + $0x2a0] sm:$0xff]
    %v146 = vld [vmem:[#allocation2 + $0x2a8] sm:$0xff]
    %v147 = vld [vmem:[#allocation2 + $0x2b0] sm:$0xff]
    %v148 = vld [vmem:[#allocation2 + $0x2b8] sm:$0xff]
    %v149 = vld [vmem:[#allocation2 + $0x2c0] sm:$0xff]
    %v150 = vld [vmem:[#allocation2 + $0x2c8] sm:$0xff]
    %v151 = vld [vmem:[#allocation2 + $0x2d0] sm:$0xff]
    %v152 = vld [vmem:[#allocation2 + $0x2d8] sm:$0xff]
    %v153 = vld [vmem:[#allocation2 + $0x2e0] sm:$0xff]
    %v154 = vld [vmem:[#allocation2 + $0x2e8] sm:$0xff]
    %v155 = vld [vmem:[#allocation2 + $0x2f0] sm:$0xff]
    %v156 = vld [vmem:[#allocation2 + $0x2f8] sm:$0xff]
    %v157 = vld [vmem:[#allocation2 + $0x300] sm:$0xff]
    %v158 = vld [vmem:[#allocation2 + $0x308] sm:$0xff]
    %v159 = vld [vmem:[#allocation2 + $0x310] sm:$0xff]
    %v160 = vld [vmem:[#allocation2 + $0x318] sm:$0xff]
    %v161 = vld [vmem:[#allocation2 + $0x320] sm:$0xff]
    %v162 = vld [vmem:[#allocation2 + $0x328] sm:$0xff]
    %v163 = vld [vmem:[#allocation2 + $0x330] sm:$0xff]
    %v164 = vld [vmem:[#allocation2 + $0x338] sm:$0xff]
    %v165 = vld [vmem:[#allocation2 + $0x340] sm:$0xff]
    %v166 = vld [vmem:[#allocation2 + $0x348] sm:$0xff]
    %v167 = vld [vmem:[#allocation2 + $0x350] sm:$0xff]
    %v168 = vld [vmem:[#allocation2 + $0x358] sm:$0xff]
    %v169 = vld [vmem:[#allocation2 + $0x360] sm:$0xff]
    %v170 = vld [vmem:[#allocation2 + $0x368] sm:$0xff]
    %v171 = vld [vmem:[#allocation2 + $0x370] sm:$0xff]
    %v172 = vld [vmem:[#allocation2 + $0x378] sm:$0xff]
    %v173 = vld [vmem:[#allocation2 + $0x380] sm:$0xff]
    %v174 = vld [vmem:[#allocation2 + $0x388] sm:$0xff]
    %v175 = vld [vmem:[#allocation2 + $0x390] sm:$0xff]
    %v176 = vld [vmem:[#allocation2 + $0x398] sm:$0xff]
    %v177 = vld [vmem:[#allocation2 + $0x3a0] sm:$0xff]
    %v178 = vld [vmem:[#allocation2 + $0x3a8] sm:$0xff]
    %v179 = vld [vmem:[#allocation2 + $0x3b0] sm:$0xff]
    %v180 = vld [vmem:[#allocation2 + $0x3b8] sm:$0xff]
    %v181 = vld [vmem:[#allocation2 + $0x3c0] sm:$0xff]
    %v182 = vld [vmem:[#allocation2 + $0x3c8] sm:$0xff]
    %v183 = vld [vmem:[#allocation2 + $0x3d0] sm:$0xff]
    %v184 = vld [vmem:[#allocation2 + $0x3d8] sm:$0xff]
    %v185 = vld [vmem:[#allocation2 + $0x3e0] sm:$0xff]
    %v186 = vld [vmem:[#allocation2 + $0x3e8] sm:$0xff]
    %v187 = vld [vmem:[#allocation2 + $0x3f0] sm:$0xff]
    %v188 = vld [vmem:[#allocation2 + $0x3f8] sm:$0xff]
    %v189 = vld [vmem:[%s2] sm:$0x1]
    %v191 = vlaneseq
    %v192 = vshrl.u32 %v191, 7
    %v193 = vsub.s32 0, %v192
    %v194 = vrot.slane %v189, %v193
    %196 = vmatprep.subr.mxu0 0.0
    %197 = vmatpush1.msra.mxu0 %v76
    %198 = vmatprep.subr.mxu0 0.0
    %199 = vmatpush1.msra.mxu0 %v75
    %200 = vmatprep.subr.mxu0 0.0
    %201 = vmatpush1.msra.mxu0 %v74
    %202 = vmatprep.subr.mxu0 0.0
    %203 = vmatpush1.msra.mxu0 %v73
    %204 = vmatprep.subr.mxu0 0.0
    %205 = vmatpush1.msra.mxu0 %v72
    %206 = vmatprep.subr.mxu0 0.0
    %207 = vmatpush1.msra.mxu0 %v71
    %208 = vmatprep.subr.mxu0 0.0
    %209 = vmatpush1.msra.mxu0 %v70
    %210 = vmatprep.subr.mxu0 0.0
    %211 = vmatpush1.msra.mxu0 %v69
    %212 = vmatprep.subr.mxu0 0.0
    %213 = vmatpush1.msra.mxu0 %v68
    %214 = vmatprep.subr.mxu0 0.0
    %215 = vmatpush1.msra.mxu0 %v67
    %216 = vmatprep.subr.mxu0 0.0
    %217 = vmatpush1.msra.mxu0 %v66
    %218 = vmatprep.subr.mxu0 0.0
    %219 = vmatpush1.msra.mxu0 %v65
    %220 = vmatprep.subr.mxu0 0.0
    %221 = vmatpush1.msra.mxu0 %v64
    %222 = vmatprep.subr.mxu0 0.0
    %223 = vmatpush1.msra.mxu0 %v63
    %224 = vmatprep.subr.mxu0 0.0
    %225 = vmatpush1.msra.mxu0 %v62
    %226 = vmatprep.subr.mxu0 0.0
    %227 = vmatpush1.msra.mxu0 %v61
    %228 = vmatprep.subr.mxu0 0.0
    %229 = vmatpush2.msra.mxu0 %v92
    %230 = vmatprep.subr.mxu0 0.0
    %231 = vmatpush2.msra.mxu0 %v91
    %232 = vmatprep.subr.mxu0 0.0
    %233 = vmatpush2.msra.mxu0 %v90
    %234 = vmatprep.subr.mxu0 0.0
    %235 = vmatpush2.msra.mxu0 %v89
    %236 = vmatprep.subr.mxu0 0.0
    %237 = vmatpush2.msra.mxu0 %v88
    %238 = vmatprep.subr.mxu0 0.0
    %239 = vmatpush2.msra.mxu0 %v87
    %240 = vmatprep.subr.mxu0 0.0
    %241 = vmatpush2.msra.mxu0 %v86
    %242 = vmatprep.subr.mxu0 0.0
    %243 = vmatpush2.msra.mxu0 %v85
    %244 = vmatprep.subr.mxu0 0.0
    %245 = vmatpush2.msra.mxu0 %v84
    %246 = vmatprep.subr.mxu0 0.0
    %247 = vmatpush2.msra.mxu0 %v83
    %248 = vmatprep.subr.mxu0 0.0
    %249 = vmatpush2.msra.mxu0 %v82
    %250 = vmatprep.subr.mxu0 0.0
    %251 = vmatpush2.msra.mxu0 %v81
    %252 = vmatprep.subr.mxu0 0.0
    %253 = vmatpush2.msra.mxu0 %v80
    %254 = vmatprep.subr.mxu0 0.0
    %255 = vmatpush2.msra.mxu0 %v79
    %256 = vmatprep.subr.mxu0 0.0
    %257 = vmatpush2.msra.mxu0 %v78
    %258 = vmatprep.subr.mxu0 0.0
    %259 = vmatpush2.msra.mxu0 %v77
    %260 = vmatprep.mubr.f32.mxu0 %v54
    %261 = vmatmul.mubr.f32.gmra.mxu0 %v53
    %v262 = vpop.f32.mrf.mxu0
    %v263 = vadd.f32 %v194, %v262
    %v264 = vpop.f32.mrf.mxu0
    %265 = vdwg.mxu0
    %266 = vmatprep.subr.mxu0 0.0
    %267 = vmatpush1.msra.mxu0 %v108
    %268 = vmatprep.subr.mxu0 0.0
    %269 = vmatpush1.msra.mxu0 %v107
    %270 = vmatprep.subr.mxu0 0.0
    %271 = vmatpush1.msra.mxu0 %v106
    %272 = vmatprep.subr.mxu0 0.0
    %273 = vmatpush1.msra.mxu0 %v105
    %274 = vmatprep.subr.mxu0 0.0
    %275 = vmatpush1.msra.mxu0 %v104
    %276 = vmatprep.subr.mxu0 0.0
    %277 = vmatpush1.msra.mxu0 %v103
    %278 = vmatprep.subr.mxu0 0.0
    %279 = vmatpush1.msra.mxu0 %v102
    %280 = vmatprep.subr.mxu0 0.0
    %281 = vmatpush1.msra.mxu0 %v101
    %282 = vmatprep.subr.mxu0 0.0
    %283 = vmatpush1.msra.mxu0 %v100
    %284 = vmatprep.subr.mxu0 0.0
    %285 = vmatpush1.msra.mxu0 %v99
    %286 = vmatprep.subr.mxu0 0.0
    %287 = vmatpush1.msra.mxu0 %v98
    %288 = vmatprep.subr.mxu0 0.0
    %289 = vmatpush1.msra.mxu0 %v97
    %290 = vmatprep.subr.mxu0 0.0
    %291 = vmatpush1.msra.mxu0 %v96
    %292 = vmatprep.subr.mxu0 0.0
    %293 = vmatpush1.msra.mxu0 %v95
    %294 = vmatprep.subr.mxu0 0.0
    %295 = vmatpush1.msra.mxu0 %v94
    %296 = vmatprep.subr.mxu0 0.0
    %297 = vmatpush1.msra.mxu0 %v93
    %298 = vmatprep.subr.mxu0 0.0
    %299 = vmatpush2.msra.mxu0 %v124
    %300 = vmatprep.subr.mxu0 0.0
    %301 = vmatpush2.msra.mxu0 %v123
    %302 = vmatprep.subr.mxu0 0.0
    %303 = vmatpush2.msra.mxu0 %v122
    %304 = vmatprep.subr.mxu0 0.0
    %305 = vmatpush2.msra.mxu0 %v121
    %306 = vmatprep.subr.mxu0 0.0
    %307 = vmatpush2.msra.mxu0 %v120
    %308 = vmatprep.subr.mxu0 0.0
    %309 = vmatpush2.msra.mxu0 %v119
    %310 = vmatprep.subr.mxu0 0.0
    %311 = vmatpush2.msra.mxu0 %v118
    %312 = vmatprep.subr.mxu0 0.0
    %313 = vmatpush2.msra.mxu0 %v117
    %314 = vmatprep.subr.mxu0 0.0
    %315 = vmatpush2.msra.mxu0 %v116
    %316 = vmatprep.subr.mxu0 0.0
    %317 = vmatpush2.msra.mxu0 %v115
    %318 = vmatprep.subr.mxu0 0.0
    %319 = vmatpush2.msra.mxu0 %v114
    %320 = vmatprep.subr.mxu0 0.0
    %321 = vmatpush2.msra.mxu0 %v113
    %322 = vmatprep.subr.mxu0 0.0
    %323 = vmatpush2.msra.mxu0 %v112
    %324 = vmatprep.subr.mxu0 0.0
    %325 = vmatpush2.msra.mxu0 %v111
    %326 = vmatprep.subr.mxu0 0.0
    %327 = vmatpush2.msra.mxu0 %v110
    %328 = vmatprep.subr.mxu0 0.0
    %329 = vmatpush2.msra.mxu0 %v109
    %330 = vmatprep.mubr.f32.mxu0 %v56
    %331 = vmatmul.mubr.f32.gmra.mxu0 %v55
    %v332 = vpop.f32.mrf.mxu0
    %v333 = vadd.f32 %v263, %v332
    %v334 = vpop.f32.mrf.mxu0
    %335 = vdwg.mxu0
    %336 = vmatprep.subr.mxu0 0.0
    %337 = vmatpush1.msra.mxu0 %v140
    %338 = vmatprep.subr.mxu0 0.0
    %339 = vmatpush1.msra.mxu0 %v139
    %340 = vmatprep.subr.mxu0 0.0
    %341 = vmatpush1.msra.mxu0 %v138
    %342 = vmatprep.subr.mxu0 0.0
    %343 = vmatpush1.msra.mxu0 %v137
    %344 = vmatprep.subr.mxu0 0.0
    %345 = vmatpush1.msra.mxu0 %v136
    %346 = vmatprep.subr.mxu0 0.0
    %347 = vmatpush1.msra.mxu0 %v135
    %348 = vmatprep.subr.mxu0 0.0
    %349 = vmatpush1.msra.mxu0 %v134
    %350 = vmatprep.subr.mxu0 0.0
    %351 = vmatpush1.msra.mxu0 %v133
    %352 = vmatprep.subr.mxu0 0.0
    %353 = vmatpush1.msra.mxu0 %v132
    %354 = vmatprep.subr.mxu0 0.0
    %355 = vmatpush1.msra.mxu0 %v131
    %356 = vmatprep.subr.mxu0 0.0
    %357 = vmatpush1.msra.mxu0 %v130
    %358 = vmatprep.subr.mxu0 0.0
    %359 = vmatpush1.msra.mxu0 %v129
    %360 = vmatprep.subr.mxu0 0.0
    %361 = vmatpush1.msra.mxu0 %v128
    %362 = vmatprep.subr.mxu0 0.0
    %363 = vmatpush1.msra.mxu0 %v127
    %364 = vmatprep.subr.mxu0 0.0
    %365 = vmatpush1.msra.mxu0 %v126
    %366 = vmatprep.subr.mxu0 0.0
    %367 = vmatpush1.msra.mxu0 %v125
    %368 = vmatprep.subr.mxu0 0.0
    %369 = vmatpush2.msra.mxu0 %v156
    %370 = vmatprep.subr.mxu0 0.0
    %371 = vmatpush2.msra.mxu0 %v155
    %372 = vmatprep.subr.mxu0 0.0
    %373 = vmatpush2.msra.mxu0 %v154
    %374 = vmatprep.subr.mxu0 0.0
    %375 = vmatpush2.msra.mxu0 %v153
    %376 = vmatprep.subr.mxu0 0.0
    %377 = vmatpush2.msra.mxu0 %v152
    %378 = vmatprep.subr.mxu0 0.0
    %379 = vmatpush2.msra.mxu0 %v151
    %380 = vmatprep.subr.mxu0 0.0
    %381 = vmatpush2.msra.mxu0 %v150
    %382 = vmatprep.subr.mxu0 0.0
    %383 = vmatpush2.msra.mxu0 %v149
    %384 = vmatprep.subr.mxu0 0.0
    %385 = vmatpush2.msra.mxu0 %v148
    %386 = vmatprep.subr.mxu0 0.0
    %387 = vmatpush2.msra.mxu0 %v147
    %388 = vmatprep.subr.mxu0 0.0
    %389 = vmatpush2.msra.mxu0 %v146
    %390 = vmatprep.subr.mxu0 0.0
    %391 = vmatpush2.msra.mxu0 %v145
    %392 = vmatprep.subr.mxu0 0.0
    %393 = vmatpush2.msra.mxu0 %v144
    %394 = vmatprep.subr.mxu0 0.0
    %395 = vmatpush2.msra.mxu0 %v143
    %396 = vmatprep.subr.mxu0 0.0
    %397 = vmatpush2.msra.mxu0 %v142
    %398 = vmatprep.subr.mxu0 0.0
    %399 = vmatpush2.msra.mxu0 %v141
    %400 = vmatprep.mubr.f32.mxu0 %v58
    %401 = vmatmul.mubr.f32.gmra.mxu0 %v57
    %v402 = vpop.f32.mrf.mxu0
    %v403 = vadd.f32 %v333, %v402
    %v404 = vpop.f32.mrf.mxu0
    %405 = vdwg.mxu0
    %406 = vmatprep.subr.mxu0 0.0
    %407 = vmatpush1.msra.mxu0 %v172
    %408 = vmatprep.subr.mxu0 0.0
    %409 = vmatpush1.msra.mxu0 %v171
    %410 = vmatprep.subr.mxu0 0.0
    %411 = vmatpush1.msra.mxu0 %v170
    %412 = vmatprep.subr.mxu0 0.0
    %413 = vmatpush1.msra.mxu0 %v169
    %414 = vmatprep.subr.mxu0 0.0
    %415 = vmatpush1.msra.mxu0 %v168
    %416 = vmatprep.subr.mxu0 0.0
    %417 = vmatpush1.msra.mxu0 %v167
    %418 = vmatprep.subr.mxu0 0.0
    %419 = vmatpush1.msra.mxu0 %v166
    %420 = vmatprep.subr.mxu0 0.0
    %421 = vmatpush1.msra.mxu0 %v165
    %422 = vmatprep.subr.mxu0 0.0
    %423 = vmatpush1.msra.mxu0 %v164
    %424 = vmatprep.subr.mxu0 0.0
    %425 = vmatpush1.msra.mxu0 %v163
    %426 = vmatprep.subr.mxu0 0.0
    %427 = vmatpush1.msra.mxu0 %v162
    %428 = vmatprep.subr.mxu0 0.0
    %429 = vmatpush1.msra.mxu0 %v161
    %430 = vmatprep.subr.mxu0 0.0
    %431 = vmatpush1.msra.mxu0 %v160
    %432 = vmatprep.subr.mxu0 0.0
    %433 = vmatpush1.msra.mxu0 %v159
    %434 = vmatprep.subr.mxu0 0.0
    %435 = vmatpush1.msra.mxu0 %v158
    %436 = vmatprep.subr.mxu0 0.0
    %437 = vmatpush1.msra.mxu0 %v157
    %438 = vmatprep.subr.mxu0 0.0
    %439 = vmatpush2.msra.mxu0 %v188
    %440 = vmatprep.subr.mxu0 0.0
    %441 = vmatpush2.msra.mxu0 %v187
    %442 = vmatprep.subr.mxu0 0.0
    %443 = vmatpush2.msra.mxu0 %v186
    %444 = vmatprep.subr.mxu0 0.0
    %445 = vmatpush2.msra.mxu0 %v185
    %446 = vmatprep.subr.mxu0 0.0
    %447 = vmatpush2.msra.mxu0 %v184
    %448 = vmatprep.subr.mxu0 0.0
    %449 = vmatpush2.msra.mxu0 %v183
    %450 = vmatprep.subr.mxu0 0.0
    %451 = vmatpush2.msra.mxu0 %v182
    %452 = vmatprep.subr.mxu0 0.0
    %453 = vmatpush2.msra.mxu0 %v181
    %454 = vmatprep.subr.mxu0 0.0
    %455 = vmatpush2.msra.mxu0 %v180
    %456 = vmatprep.subr.mxu0 0.0
    %457 = vmatpush2.msra.mxu0 %v179
    %458 = vmatprep.subr.mxu0 0.0
    %459 = vmatpush2.msra.mxu0 %v178
    %460 = vmatprep.subr.mxu0 0.0
    %461 = vmatpush2.msra.mxu0 %v177
    %462 = vmatprep.subr.mxu0 0.0
    %463 = vmatpush2.msra.mxu0 %v176
    %464 = vmatprep.subr.mxu0 0.0
    %465 = vmatpush2.msra.mxu0 %v175
    %466 = vmatprep.subr.mxu0 0.0
    %467 = vmatpush2.msra.mxu0 %v174
    %468 = vmatprep.subr.mxu0 0.0
    %469 = vmatpush2.msra.mxu0 %v173
    %470 = vmatprep.mubr.f32.mxu0 %v60
    %471 = vmatmul.mubr.f32.gmra.mxu0 %v59
    %v472 = vpop.f32.mrf.mxu0
    %v473 = vadd.f32 %v403, %v472
    %v474 = vpop.f32.mrf.mxu0
    %475 = vdwg.mxu0
    %v476 = vmax.f32 %v473, 0.0
    %v477 = vld [vmem:[%s3] sm:$0xff]
    %v478 = vld [vmem:[%s3 + $0x8] sm:$0xff]
    %v479 = vld [vmem:[%s3 + $0x10] sm:$0xff]
    %v480 = vld [vmem:[%s3 + $0x18] sm:$0xff]
    %v481 = vld [vmem:[%s3 + $0x20] sm:$0xff]
    %v482 = vld [vmem:[%s3 + $0x28] sm:$0xff]
    %v483 = vld [vmem:[%s3 + $0x30] sm:$0xff]
    %v484 = vld [vmem:[%s3 + $0x38] sm:$0xff]
    %v485 = vld [vmem:[%s3 + $0x40] sm:$0xff]
    %v486 = vld [vmem:[%s3 + $0x48] sm:$0xff]
    %v487 = vld [vmem:[%s3 + $0x50] sm:$0xff]
    %v488 = vld [vmem:[%s3 + $0x58] sm:$0xff]
    %v489 = vld [vmem:[%s3 + $0x60] sm:$0xff]
    %v490 = vld [vmem:[%s3 + $0x68] sm:$0xff]
    %v491 = vld [vmem:[%s3 + $0x70] sm:$0xff]
    %v492 = vld [vmem:[%s3 + $0x78] sm:$0xff]
    %v493 = vld [vmem:[%s4] sm:$0x1]
    %v495 = vlaneseq
    %v496 = vshrl.u32 %v495, 7
    %v497 = vsub.s32 0, %v496
    %v498 = vrot.slane %v493, %v497
    %500 = vmatprep.subr.mxu0 0.0
    %501 = vmatpush1.msra.mxu0 %v492
    %502 = vmatprep.subr.mxu0 0.0
    %503 = vmatpush1.msra.mxu0 %v491
    %504 = vmatprep.subr.mxu0 0.0
    %505 = vmatpush1.msra.mxu0 %v490
    %506 = vmatprep.subr.mxu0 0.0
    %507 = vmatpush1.msra.mxu0 %v489
    %508 = vmatprep.subr.mxu0 0.0
    %509 = vmatpush1.msra.mxu0 %v488
    %510 = vmatprep.subr.mxu0 0.0
    %511 = vmatpush1.msra.mxu0 %v487
    %512 = vmatprep.subr.mxu0 0.0
    %513 = vmatpush1.msra.mxu0 %v486
    %514 = vmatprep.subr.mxu0 0.0
    %515 = vmatpush1.msra.mxu0 %v485
    %516 = vmatprep.subr.mxu0 0.0
    %517 = vmatpush1.msra.mxu0 %v484
    %518 = vmatprep.subr.mxu0 0.0
    %519 = vmatpush1.msra.mxu0 %v483
    %520 = vmatprep.subr.mxu0 0.0
    %521 = vmatpush1.msra.mxu0 %v482
    %522 = vmatprep.subr.mxu0 0.0
    %523 = vmatpush1.msra.mxu0 %v481
    %524 = vmatprep.subr.mxu0 0.0
    %525 = vmatpush1.msra.mxu0 %v480
    %526 = vmatprep.subr.mxu0 0.0
    %527 = vmatpush1.msra.mxu0 %v479
    %528 = vmatprep.subr.mxu0 0.0
    %529 = vmatpush1.msra.mxu0 %v478
    %530 = vmatprep.subr.mxu0 0.0
    %531 = vmatpush1.msra.mxu0 %v477
    %532 = vmatprep.subr.mxu0 0.0
    %533 = vmatpush2.msra.mxu0 0.0
    %534 = vmatprep.subr.mxu0 0.0
    %535 = vmatpush2.msra.mxu0 0.0
    %536 = vmatprep.subr.mxu0 0.0
    %537 = vmatpush2.msra.mxu0 0.0
    %538 = vmatprep.subr.mxu0 0.0
    %539 = vmatpush2.msra.mxu0 0.0
    %540 = vmatprep.subr.mxu0 0.0
    %541 = vmatpush2.msra.mxu0 0.0
    %542 = vmatprep.subr.mxu0 0.0
    %543 = vmatpush2.msra.mxu0 0.0
    %544 = vmatprep.subr.mxu0 0.0
    %545 = vmatpush2.msra.mxu0 0.0
    %546 = vmatprep.subr.mxu0 0.0
    %547 = vmatpush2.msra.mxu0 0.0
    %548 = vmatprep.subr.mxu0 0.0
    %549 = vmatpush2.msra.mxu0 0.0
    %550 = vmatprep.subr.mxu0 0.0
    %551 = vmatpush2.msra.mxu0 0.0
    %552 = vmatprep.subr.mxu0 0.0
    %553 = vmatpush2.msra.mxu0 0.0
    %554 = vmatprep.subr.mxu0 0.0
    %555 = vmatpush2.msra.mxu0 0.0
    %556 = vmatprep.subr.mxu0 0.0
    %557 = vmatpush2.msra.mxu0 0.0
    %558 = vmatprep.subr.mxu0 0.0
    %559 = vmatpush2.msra.mxu0 0.0
    %560 = vmatprep.subr.mxu0 0.0
    %561 = vmatpush2.msra.mxu0 0.0
    %562 = vmatprep.subr.mxu0 0.0
    %563 = vmatpush2.msra.mxu0 0.0
    %564 = vmatprep.mubr.f32.mxu0 0.0
    %565 = vmatmul.mubr.f32.gmra.mxu0 %v476
    %v566 = vpop.f32.mrf.mxu0
    %v567 = vadd.f32 %v498, %v566
    %v568 = vpop.f32.mrf.mxu0
    %569 = vdwg.mxu0
    %v570 = vmax.f32 %v567, 0.0
    %v571 = vld [vmem:[%s5] sm:$0xff]
    %v572 = vld [vmem:[%s5 + $0x8] sm:$0xff]
    %v573 = vld [vmem:[%s5 + $0x10] sm:$0xff]
    %v574 = vld [vmem:[%s5 + $0x18] sm:$0xff]
    %v575 = vld [vmem:[%s5 + $0x20] sm:$0xff]
    %v576 = vld [vmem:[%s5 + $0x28] sm:$0xff]
    %v577 = vld [vmem:[%s5 + $0x30] sm:$0xff]
    %v578 = vld [vmem:[%s5 + $0x38] sm:$0xff]
    %v579 = vld [vmem:[%s6] sm:$0x1]
    %v581 = vlaneseq
    %v582 = vshrl.u32 %v581, 7
    %v583 = vsub.s32 0, %v582
    %v584 = vrot.slane %v579, %v583
    %vm586 = vcmask 523264
    %v588 = vsel %vm586, %v570, 0
    %590 = vmatprep.subr.mxu0 0.0
    %591 = vmatpush1.msra.mxu0 0.0
    %592 = vmatprep.subr.mxu0 0.0
    %593 = vmatpush1.msra.mxu0 0.0
    %594 = vmatprep.subr.mxu0 0.0
    %595 = vmatpush1.msra.mxu0 0.0
    %596 = vmatprep.subr.mxu0 0.0
    %597 = vmatpush1.msra.mxu0 0.0
    %598 = vmatprep.subr.mxu0 0.0
    %599 = vmatpush1.msra.mxu0 0.0
    %600 = vmatprep.subr.mxu0 0.0
    %601 = vmatpush1.msra.mxu0 0.0
    %602 = vmatprep.subr.mxu0 0.0
    %603 = vmatpush1.msra.mxu0 0.0
    %604 = vmatprep.subr.mxu0 0.0
    %605 = vmatpush1.msra.mxu0 0.0
    %606 = vmatprep.subr.mxu0 0.0
    %607 = vmatpush1.msra.mxu0 %v578
    %608 = vmatprep.subr.mxu0 0.0
    %609 = vmatpush1.msra.mxu0 %v577
    %610 = vmatprep.subr.mxu0 0.0
    %611 = vmatpush1.msra.mxu0 %v576
    %612 = vmatprep.subr.mxu0 0.0
    %613 = vmatpush1.msra.mxu0 %v575
    %614 = vmatprep.subr.mxu0 0.0
    %615 = vmatpush1.msra.mxu0 %v574
    %616 = vmatprep.subr.mxu0 0.0
    %617 = vmatpush1.msra.mxu0 %v573
    %618 = vmatprep.subr.mxu0 0.0
    %619 = vmatpush1.msra.mxu0 %v572
    %620 = vmatprep.subr.mxu0 0.0
    %621 = vmatpush1.msra.mxu0 %v571
    %622 = vmatprep.subr.mxu0 0.0
    %623 = vmatpush2.msra.mxu0 0.0
    %624 = vmatprep.subr.mxu0 0.0
    %625 = vmatpush2.msra.mxu0 0.0
    %626 = vmatprep.subr.mxu0 0.0
    %627 = vmatpush2.msra.mxu0 0.0
    %628 = vmatprep.subr.mxu0 0.0
    %629 = vmatpush2.msra.mxu0 0.0
    %630 = vmatprep.subr.mxu0 0.0
    %631 = vmatpush2.msra.mxu0 0.0
    %632 = vmatprep.subr.mxu0 0.0
    %633 = vmatpush2.msra.mxu0 0.0
    %634 = vmatprep.subr.mxu0 0.0
    %635 = vmatpush2.msra.mxu0 0.0
    %636 = vmatprep.subr.mxu0 0.0
    %637 = vmatpush2.msra.mxu0 0.0
    %638 = vmatprep.subr.mxu0 0.0
    %639 = vmatpush2.msra.mxu0 0.0
    %640 = vmatprep.subr.mxu0 0.0
    %641 = vmatpush2.msra.mxu0 0.0
    %642 = vmatprep.subr.mxu0 0.0
    %643 = vmatpush2.msra.mxu0 0.0
    %644 = vmatprep.subr.mxu0 0.0
    %645 = vmatpush2.msra.mxu0 0.0
    %646 = vmatprep.subr.mxu0 0.0
    %647 = vmatpush2.msra.mxu0 0.0
    %648 = vmatprep.subr.mxu0 0.0
    %649 = vmatpush2.msra.mxu0 0.0
    %650 = vmatprep.subr.mxu0 0.0
    %651 = vmatpush2.msra.mxu0 0.0
    %652 = vmatprep.subr.mxu0 0.0
    %653 = vmatpush2.msra.mxu0 0.0
    %654 = vmatprep.mubr.f32.mxu0 0.0
    %655 = vmatmul.mubr.f32.gmra.mxu0 %v588
    %v656 = vpop.f32.mrf.mxu0
    %v657 = vadd.f32 %v584, %v656
    %v658 = vpop.f32.mrf.mxu0
    %659 = vdwg.mxu0
    %v660 = vmax.f32 %v657, 0.0
    %v661 = vld [vmem:[%s7] sm:$0xff]
    %v662 = vld [vmem:[%s7 + $0x8] sm:$0xff]
    %v663 = vld [vmem:[%s7 + $0x10] sm:$0xff]
    %v664 = vld [vmem:[%s7 + $0x18] sm:$0xff]
    %v665 = vld [vmem:[%s8] sm:$0x1]
    %v667 = vlaneseq
    %v668 = vshrl.u32 %v667, 7
    %v669 = vsub.s32 0, %v668
    %v670 = vrot.slane %v665, %v669
    %vm672 = vcmask 261120
    %v674 = vsel %vm672, %v660, 0
    %676 = vmatprep.subr.mxu0 0.0
    %677 = vmatpush1.msra.mxu0 0.0
    %678 = vmatprep.subr.mxu0 0.0
    %679 = vmatpush1.msra.mxu0 0.0
    %680 = vmatprep.subr.mxu0 0.0
    %681 = vmatpush1.msra.mxu0 0.0
    %682 = vmatprep.subr.mxu0 0.0
    %683 = vmatpush1.msra.mxu0 0.0
    %684 = vmatprep.subr.mxu0 0.0
    %685 = vmatpush1.msra.mxu0 0.0
    %686 = vmatprep.subr.mxu0 0.0
    %687 = vmatpush1.msra.mxu0 0.0
    %688 = vmatprep.subr.mxu0 0.0
    %689 = vmatpush1.msra.mxu0 0.0
    %690 = vmatprep.subr.mxu0 0.0
    %691 = vmatpush1.msra.mxu0 0.0
    %692 = vmatprep.subr.mxu0 0.0
    %693 = vmatpush1.msra.mxu0 0.0
    %694 = vmatprep.subr.mxu0 0.0
    %695 = vmatpush1.msra.mxu0 0.0
    %696 = vmatprep.subr.mxu0 0.0
    %697 = vmatpush1.msra.mxu0 0.0
    %698 = vmatprep.subr.mxu0 0.0
    %699 = vmatpush1.msra.mxu0 0.0
    %700 = vmatprep.subr.mxu0 0.0
    %701 = vmatpush1.msra.mxu0 %v664
    %702 = vmatprep.subr.mxu0 0.0
    %703 = vmatpush1.msra.mxu0 %v663
    %704 = vmatprep.subr.mxu0 0.0
    %705 = vmatpush1.msra.mxu0 %v662
    %706 = vmatprep.subr.mxu0 0.0
    %707 = vmatpush1.msra.mxu0 %v661
    %708 = vmatprep.subr.mxu0 0.0
    %709 = vmatpush2.msra.mxu0 0.0
    %710 = vmatprep.subr.mxu0 0.0
    %711 = vmatpush2.msra.mxu0 0.0
    %712 = vmatprep.subr.mxu0 0.0
    %713 = vmatpush2.msra.mxu0 0.0
    %714 = vmatprep.subr.mxu0 0.0
    %715 = vmatpush2.msra.mxu0 0.0
    %716 = vmatprep.subr.mxu0 0.0
    %717 = vmatpush2.msra.mxu0 0.0
    %718 = vmatprep.subr.mxu0 0.0
    %719 = vmatpush2.msra.mxu0 0.0
    %720 = vmatprep.subr.mxu0 0.0
    %721 = vmatpush2.msra.mxu0 0.0
    %722 = vmatprep.subr.mxu0 0.0
    %723 = vmatpush2.msra.mxu0 0.0
    %724 = vmatprep.subr.mxu0 0.0
    %725 = vmatpush2.msra.mxu0 0.0
    %726 = vmatprep.subr.mxu0 0.0
    %727 = vmatpush2.msra.mxu0 0.0
    %728 = vmatprep.subr.mxu0 0.0
    %729 = vmatpush2.msra.mxu0 0.0
    %730 = vmatprep.subr.mxu0 0.0
    %731 = vmatpush2.msra.mxu0 0.0
    %732 = vmatprep.subr.mxu0 0.0
    %733 = vmatpush2.msra.mxu0 0.0
    %734 = vmatprep.subr.mxu0 0.0
    %735 = vmatpush2.msra.mxu0 0.0
    %736 = vmatprep.subr.mxu0 0.0
    %737 = vmatpush2.msra.mxu0 0.0
    %738 = vmatprep.subr.mxu0 0.0
    %739 = vmatpush2.msra.mxu0 0.0
    %740 = vmatprep.mubr.f32.mxu0 0.0
    %741 = vmatmul.mubr.f32.gmra.mxu0 %v674
    %v742 = vpop.f32.mrf.mxu0
    %v743 = vadd.f32 %v670, %v742
    %v744 = vpop.f32.mrf.mxu0
    %745 = vdwg.mxu0
    %v746 = vmax.f32 %v743, 0.0
    %v747 = vld [vmem:[%s9] sm:$0xff]
    %v748 = vld [vmem:[%s9 + $0x8] sm:$0xff]
    %v749 = vld [vmem:[%s10] sm:$0x1]
    %v751 = vlaneseq
    %v752 = vshrl.u32 %v751, 7
    %v753 = vsub.s32 0, %v752
    %v754 = vrot.slane %v749, %v753
    %vm756 = vcmask 130048
    %v758 = vsel %vm756, %v746, 0
    %760 = vmatprep.subr.mxu0 0.0
    %761 = vmatpush1.msra.mxu0 0.0
    %762 = vmatprep.subr.mxu0 0.0
    %763 = vmatpush1.msra.mxu0 0.0
    %764 = vmatprep.subr.mxu0 0.0
    %765 = vmatpush1.msra.mxu0 0.0
    %766 = vmatprep.subr.mxu0 0.0
    %767 = vmatpush1.msra.mxu0 0.0
    %768 = vmatprep.subr.mxu0 0.0
    %769 = vmatpush1.msra.mxu0 0.0
    %770 = vmatprep.subr.mxu0 0.0
    %771 = vmatpush1.msra.mxu0 0.0
    %772 = vmatprep.subr.mxu0 0.0
    %773 = vmatpush1.msra.mxu0 0.0
    %774 = vmatprep.subr.mxu0 0.0
    %775 = vmatpush1.msra.mxu0 0.0
    %776 = vmatprep.subr.mxu0 0.0
    %777 = vmatpush1.msra.mxu0 0.0
    %778 = vmatprep.subr.mxu0 0.0
    %779 = vmatpush1.msra.mxu0 0.0
    %780 = vmatprep.subr.mxu0 0.0
    %781 = vmatpush1.msra.mxu0 0.0
    %782 = vmatprep.subr.mxu0 0.0
    %783 = vmatpush1.msra.mxu0 0.0
    %784 = vmatprep.subr.mxu0 0.0
    %785 = vmatpush1.msra.mxu0 0.0
    %786 = vmatprep.subr.mxu0 0.0
    %787 = vmatpush1.msra.mxu0 0.0
    %788 = vmatprep.subr.mxu0 0.0
    %789 = vmatpush1.msra.mxu0 %v748
    %790 = vmatprep.subr.mxu0 0.0
    %791 = vmatpush1.msra.mxu0 %v747
    %792 = vmatprep.subr.mxu0 0.0
    %793 = vmatpush2.msra.mxu0 0.0
    %794 = vmatprep.subr.mxu0 0.0
    %795 = vmatpush2.msra.mxu0 0.0
    %796 = vmatprep.subr.mxu0 0.0
    %797 = vmatpush2.msra.mxu0 0.0
    %798 = vmatprep.subr.mxu0 0.0
    %799 = vmatpush2.msra.mxu0 0.0
    %800 = vmatprep.subr.mxu0 0.0
    %801 = vmatpush2.msra.mxu0 0.0
    %802 = vmatprep.subr.mxu0 0.0
    %803 = vmatpush2.msra.mxu0 0.0
    %804 = vmatprep.subr.mxu0 0.0
    %805 = vmatpush2.msra.mxu0 0.0
    %806 = vmatprep.subr.mxu0 0.0
    %807 = vmatpush2.msra.mxu0 0.0
    %808 = vmatprep.subr.mxu0 0.0
    %809 = vmatpush2.msra.mxu0 0.0
    %810 = vmatprep.subr.mxu0 0.0
    %811 = vmatpush2.msra.mxu0 0.0
    %812 = vmatprep.subr.mxu0 0.0
    %813 = vmatpush2.msra.mxu0 0.0
    %814 = vmatprep.subr.mxu0 0.0
    %815 = vmatpush2.msra.mxu0 0.0
    %816 = vmatprep.subr.mxu0 0.0
    %817 = vmatpush2.msra.mxu0 0.0
    %818 = vmatprep.subr.mxu0 0.0
    %819 = vmatpush2.msra.mxu0 0.0
    %820 = vmatprep.subr.mxu0 0.0
    %821 = vmatpush2.msra.mxu0 0.0
    %822 = vmatprep.subr.mxu0 0.0
    %823 = vmatpush2.msra.mxu0 0.0
    %824 = vmatprep.mubr.f32.mxu0 0.0
    %825 = vmatmul.mubr.f32.gmra.mxu0 %v758
    %v826 = vpop.f32.mrf.mxu0
    %v827 = vadd.f32 %v754, %v826
    %v828 = vpop.f32.mrf.mxu0
    %829 = vdwg.mxu0
    %vm830 = vcmask 64512
    %v831 = vsel %vm830, %v827, -inf
    %832 = vmax.xlane.f32.xlu0 %v831
    %v833 = vpop.xlane.xlu0 %832
    %v834 = vsub.f32 %v827, %v833
    %v835 = vmul.f32 %v834, 1.442695
    %v836 = vpow.pop %v835
    %v837 = vsel %vm830, %v836, 0.0
    %838 = vadd.xlane.f32.xlu0 %v837
    %v839 = vpop.xlane.xlu0 %838
    %v840 = vrcp.pop %v839
    %v841 = vmul.f32 %v836, %v840
    %842 = vst.msk [vmem:[#allocation5] sm:$0xff] %vm830, %v841
    // Predicated region
    $region50: #{imagebind_mlp_prepared.1} parent=1 // pred_check
      _
    $region51: #{imagebind_mlp_prepared.1} parent=1 // pred_check_branch
      %844 = sbr.rel (0) target = $region53
    $region52: #{imagebind_mlp_prepared.1} parent=1 // pred_region
      %s846 = ssub.s32 128, 128
      %847 = vsyncadd [#allocation4], %s846
      %s849 = sshll.u32 [#allocation5], 4
      %s850 = int_to_ptr.vmem [resolvable:$true] %s849
      %852 = dma.vmem_to_hbm [thread:$0]  %s850, 128, %s11, [#allocation4]
    $region53: #{imagebind_mlp_prepared.1} parent=1 // pred_fallthru
      _
    // Predicated region
    $region54: #{imagebind_mlp_prepared.1} parent=1 // pred_check
      _
    $region55: #{imagebind_mlp_prepared.1} parent=1 // pred_check_branch
      %854 = sbr.rel (0) target = $region57
    $region56: #{imagebind_mlp_prepared.1} parent=1 // pred_region
      %855 = dma.done [#allocation4], 128
    $region57: #{imagebind_mlp_prepared.1} parent=1 // pred_fallthru
      _
    %856 = vsyncpa [#allocation3], 1
    %857 = vsyncpa [#allocation4], 1

</llo_original>
